<compile_context>
chip_gen: v7x
topology: tpu7x:2x2x1
jax: 0.10.0
libtpu: 0.0.40
codegen_flags: <defaults>
</compile_context>

<pallas_src>
import jax
import jax.numpy as jnp
from jax.experimental import pallas as pl
from jax.experimental.pallas import tpu as pltpu

_LANE_CANDIDATES = (1024, 512, 256, 128)  # wide, lane-dense last dim
_BLOCK_ROWS = 2048                         # multiple of 32 (uint8 native tile)


def _byte_to_float_kernel(x_ref, o_ref):
    # uint8 -> float32 cast and exact divide by 255.0 (VPU/EUP; mem-bound op).
    o_ref[...] = x_ref[...].astype(jnp.float32) / jnp.float32(255.0)


def byte_to_float(x: jax.Array) -> jax.Array:
    """Equivalent of PyTorch ByteToFloat.forward: X.float() / 255.0."""
    orig_shape = x.shape
    flat = x.reshape(-1)
    n = flat.shape[0]

    # Pick the widest lane count that divides n exactly -> no padded copy.
    lanes = next((l for l in _LANE_CANDIDATES if n % l == 0), None)
    pad = 0
    if lanes is None:
        # Rare ragged case: tiny tail pad to the next multiple of 128.
        lanes = 128
        pad = (-n) % lanes
        flat = jnp.pad(flat, (0, pad))

    rows = (n + pad) // lanes
    x2d = flat.reshape(rows, lanes)

    # Full-size blocks when the array is big; otherwise one block equal to the
    # full array dims (legal block shape, single grid step).
    block_rows = _BLOCK_ROWS if rows >= _BLOCK_ROWS else rows
    grid = (pl.cdiv(rows, block_rows),)

    out2d = pl.pallas_call(
        _byte_to_float_kernel,
        out_shape=jax.ShapeDtypeStruct((rows, lanes), jnp.float32),
        grid_spec=pltpu.PrefetchScalarGridSpec(
            num_scalar_prefetch=0,
            grid=grid,
            in_specs=[pl.BlockSpec((block_rows, lanes), lambda i: (i, 0))],
            out_specs=pl.BlockSpec((block_rows, lanes), lambda i: (i, 0)),
        ),
        compiler_params=pltpu.CompilerParams(
            dimension_semantics=("parallel",),
            vmem_limit_bytes=40 * 1024 * 1024,
        ),
    )(x2d)

    if pad:
        out = out2d.reshape(-1)[:n].reshape(orig_shape)
    else:
        out = out2d.reshape(orig_shape)
    return out


if __name__ == "__main__":
    key = jax.random.PRNGKey(0)
    # Small NCHW image batch of raw bytes, consistent with a CNN dataset pipeline.
    x = jax.random.randint(key, (2, 4, 16, 16), 0, 256, dtype=jnp.int32).astype(
        jnp.uint8
    )

    y = byte_to_float(x)
    y = jax.block_until_ready(y)

    # Reference check in plain JAX (same true divide -> should match exactly).
    ref = x.astype(jnp.float32) / 255.0
    assert y.shape == ref.shape and y.dtype == jnp.float32
    assert bool(jnp.allclose(y, ref, atol=0.0, rtol=1e-6))

    print("KERNEL_OK")
</pallas_src>

<mosaic_0001>
module attributes {stable_mosaic.version = 11 : i64} {
  func.func @_byte_to_float_kernel(%arg0: i32, %arg1: memref<2x1024xi8, #tpu.memory_space<vmem>>, %arg2: memref<2x1024xf32, #tpu.memory_space<vmem>>) attributes {dimension_semantics = [#tpu.dimension_semantics<parallel>], iteration_bounds = array<i64: 1>, scalar_prefetch = 0 : i64, scratch_operands = 0 : i64, tpu.core_type = #tpu.core_type<tc>, window_params = [{transform_indices = @transform_0, window_bounds = array<i64: 2, 1024>}, {transform_indices = @transform_1, window_bounds = array<i64: 2, 1024>}]} {
    %c0 = arith.constant 0 : index
    %c0_0 = arith.constant 0 : index
    %0 = vector.load %arg1[%c0, %c0_0] : memref<2x1024xi8, #tpu.memory_space<vmem>>, vector<2x1024xi8>
    %1 = arith.uitofp %0 : vector<2x1024xi8> to vector<2x1024xf32>
    %cst = arith.constant 2.550000e+02 : f32
    %2 = vector.broadcast %cst : f32 to vector<2x1024xf32>
    %3 = arith.divf %1, %2 : vector<2x1024xf32>
    %c0_1 = arith.constant 0 : index
    %c0_2 = arith.constant 0 : index
    %4 = vector.load %arg2[%c0_1, %c0_2] : memref<2x1024xf32, #tpu.memory_space<vmem>>, vector<2x1024xf32>
    tpu.vector_store %arg2[%c0_1, %c0_2], %3 {strides = array<i32>} : memref<2x1024xf32, #tpu.memory_space<vmem>>, vector<2x1024xf32>,
    return
  }
  func.func @transform_0(%arg0: i32) -> (i32, i32) {
    %c0_i32 = arith.constant 0 : i32
    %c0_i32_0 = arith.constant 0 : i32
    return %arg0, %c0_i32 : i32, i32
  }
  func.func @transform_1(%arg0: i32) -> (i32, i32) {
    %c0_i32 = arith.constant 0 : i32
    %c0_i32_0 = arith.constant 0 : i32
    return %arg0, %c0_i32 : i32, i32
  }
}

</mosaic_0001>

<llo_original>
// kernel: tpu_custom_call.1
$region0: #{tpu_custom_call.1}
  #allocation0 [shape = 'u32[]', space=smem, size = 0x4, offset = 0x4, fixed_abs, tag = 'smem constant byte address 0x4 - core index']
  #allocation1 [shape = 'u32[144,128]{1,0:T(1,128)}', space=vmem, size = 0x12000, scoped, tag = 'internal scratch']
  %s0 = inlined_call_operand.hbm [shape: u8[2,1024], index: 0, kind: input, shape index: {}]
  %s1 = inlined_call_operand.hbm [shape: f32[2,1024], index: 1, kind: output, shape index: {}]
  %s2 = sld [smem:[#allocation0]]
  $region18: #{tpu_custom_call.1} parent=0
    _
  %s4 = ssub.s32 1, %s2
  %s5 = scalar_select 0, %s4, %s2
  $region1: #{tpu_custom_call.1} parent=0
    #allocation2 [shape = 'u8[4096]{0}', space=vmem, size = 0x1000, scoped, tag = 'input window, operand 0, single buffered']
    #allocation3 [shape = 's32[1]{0}', space=sflag, size = 0x4, scoped, tag = 'scoped memory for tpu_custom_call.1']
    #allocation4 [shape = 's32[1]{0}', space=sflag, size = 0x4, scoped, tag = 'scoped memory for tpu_custom_call.1']
    #allocation5 [shape = 'u8[8192]{0}', space=vmem, size = 0x2000, scoped, tag = 'output window, operand 0, single buffered']
    %6 = vsyncpa [#allocation3], 0
    %7 = vsyncpa [#allocation4], 0
    // Predicated region
    $region2: #{tpu_custom_call.1} parent=1 // pred_check
      _
    $region3: #{tpu_custom_call.1} parent=1 // pred_check_branch
      %9 = sbr.rel (0) target = $region5
    $region4: #{tpu_custom_call.1} parent=1 // pred_region
      %s11 = ssub.s32 128, 128
      %12 = vsyncadd [#allocation3], %s11
      %s14 = sshll.u32 [#allocation2], 4
      %s15 = int_to_ptr.vmem [resolvable:$true] %s14
      %17 = dma.hbm_to_vmem [thread:$0]  %s0, 128, %s15, [#allocation3]
    $region5: #{tpu_custom_call.1} parent=1 // pred_fallthru
      _
    // Predicated region
    $region6: #{tpu_custom_call.1} parent=1 // pred_check
      _
    $region7: #{tpu_custom_call.1} parent=1 // pred_check_branch
      %19 = sbr.rel (0) target = $region9
    $region8: #{tpu_custom_call.1} parent=1 // pred_region
      %20 = dma.done [#allocation3], 128
    $region9: #{tpu_custom_call.1} parent=1 // pred_fallthru
      _
    %v21 = vld [vmem:[#allocation2] sm:$0xff]
    %v22 = vunpack.c.0.s8 %v21
    %v23 = vunpack.c.1.s8 %v21
    %v24 = vunpack.c.2.s8 %v21
    %v25 = vunpack.c.3.s8 %v21
    %v26 = vand.u32 %v22, 255
    %v27 = vand.u32 %v23, 255
    %v28 = vand.u32 %v24, 255
    %v29 = vand.u32 %v25, 255
    %v30 = vcvt.s32.f32 %v26
    %v31 = vcvt.s32.f32 %v27
    %v32 = vcvt.s32.f32 %v28
    %v33 = vcvt.s32.f32 %v29
    %v34 = vrcp.pop 255.0
    %v35 = vmul.f32 %v30, %v34
    %v36 = vmul.f32 %v31, %v34
    %v37 = vmul.f32 %v32, %v34
    %v38 = vmul.f32 %v33, %v34
    %v44 = vunpack.c.l.s4 1983009808
    %v45 = vunpack.c.0.s8 %v44
    %v46 = vlaneseq
    %v47 = vshrl.u32 %v46, 7
    %v48 = vsub.s32 %v45, %v47
    %v49 = vrot.slane %v35, %v48
    %v51 = vunpack.c.l.s4 1983009808
    %v52 = vunpack.c.0.s8 %v51
    %v53 = vlaneseq
    %v54 = vshrl.u32 %v53, 7
    %v55 = vsub.s32 %v52, %v54
    %v56 = vrot.slane %v36, %v55
    %v57 = vcombine.low %v49, %v56
    %v59 = vunpack.c.l.s4 1983009808
    %v60 = vunpack.c.0.s8 %v59
    %v61 = vlaneseq
    %v62 = vshrl.u32 %v61, 7
    %v63 = vsub.s32 %v60, %v62
    %v64 = vrot.slane %v37, %v63
    %v66 = vunpack.c.l.s4 1983009808
    %v67 = vunpack.c.0.s8 %v66
    %v68 = vlaneseq
    %v69 = vshrl.u32 %v68, 7
    %v70 = vsub.s32 %v67, %v69
    %v71 = vrot.slane %v38, %v70
    %v72 = vcombine.low %v64, %v71
    %75 = vst [vmem:[#allocation5] sm:$0xff] %v57
    %76 = vst [vmem:[#allocation5 + $0x8] sm:$0xff] %v72
    // Predicated region
    $region10: #{tpu_custom_call.1} parent=1 // pred_check
      _
    $region11: #{tpu_custom_call.1} parent=1 // pred_check_branch
      %78 = sbr.rel (0) target = $region13
    $region12: #{tpu_custom_call.1} parent=1 // pred_region
      %s80 = ssub.s32 256, 256
      %81 = vsyncadd [#allocation4], %s80
      %s83 = sshll.u32 [#allocation5], 4
      %s84 = int_to_ptr.vmem [resolvable:$true] %s83
      %86 = dma.vmem_to_hbm [thread:$0]  %s84, 256, %s1, [#allocation4]
    $region13: #{tpu_custom_call.1} parent=1 // pred_fallthru
      _
    // Predicated region
    $region14: #{tpu_custom_call.1} parent=1 // pred_check
      _
    $region15: #{tpu_custom_call.1} parent=1 // pred_check_branch
      %88 = sbr.rel (0) target = $region17
    $region16: #{tpu_custom_call.1} parent=1 // pred_region
      %89 = dma.done [#allocation4], 256
    $region17: #{tpu_custom_call.1} parent=1 // pred_fallthru
      _
    %90 = vsyncpa [#allocation3], 1
    %91 = vsyncpa [#allocation4], 1

</llo_original>
